<compile_context>
chip_gen: v7x
topology: tpu7x:2x2x1
jax: 0.10.0
libtpu: 0.0.40
codegen_flags: <defaults>
</compile_context>

<pallas_src>
import functools
import math

import jax
import jax.numpy as jnp
from jax.experimental import pallas as pl
from jax.experimental.pallas import tpu as pltpu


def _round_up(x: int, m: int) -> int:
    return (x + m - 1) // m * m


# -----------------------------------------------------------------------------
# Kernel body: one (tm, K) patch-row tile  @  (K, tn) projection tile, + bias.
# -----------------------------------------------------------------------------
def _proj_kernel(patches_ref, weight_ref, bias_ref, out_ref):
    acc = jnp.dot(patches_ref[...], weight_ref[...],
                  preferred_element_type=jnp.float32)
    out_ref[...] = (acc + bias_ref[...]).astype(out_ref.dtype)


# -----------------------------------------------------------------------------
# Capability probes (run once, cached).
# -----------------------------------------------------------------------------
@functools.lru_cache(maxsize=None)
def _vmem_capacity_bytes() -> int:
    try:
        cap = int(pltpu.get_tpu_info().vmem_capacity_bytes)
        if cap > 0:
            return cap
    except Exception:  # pragma: no cover - conservative fallback
        pass
    return 64 * 1024 * 1024  # v7x per-TensorCore VMEM (smallest of the targets)


@functools.lru_cache(maxsize=None)
def _pipeline_mode_supported() -> bool:
    """True iff this JAX build accepts BlockSpec(pipeline_mode=pl.Buffered(n))."""
    try:
        def _probe(x_ref, w_ref, o_ref):
            o_ref[...] = x_ref[...] + w_ref[...]

        x = jnp.zeros((32, 128), jnp.float32)
        w = jnp.zeros((16, 128), jnp.float32)
        out = pl.pallas_call(
            _probe,
            out_shape=jax.ShapeDtypeStruct((32, 128), jnp.float32),
            grid=(2,),
            in_specs=[
                pl.BlockSpec((16, 128), lambda i: (i, 0),
                             pipeline_mode=pl.Buffered(3)),
                pl.BlockSpec((16, 128), lambda i: (0, 0),
                             pipeline_mode=pl.Buffered(1)),
            ],
            out_specs=pl.BlockSpec((16, 128), lambda i: (i, 0)),
        )(x, w)
        jax.block_until_ready(out)
        return True
    except Exception:  # any failure -> fall back to default double buffering
        return False


# -----------------------------------------------------------------------------
# VMEM accounting + tile selection.
# -----------------------------------------------------------------------------
def _vmem_bytes(tm, kp, tn, c_size, out_size, n_p_buf, n_w_buf, n_b_buf):
    return (n_p_buf * tm * kp * c_size          # patch-row tiles
            + n_w_buf * kp * tn * c_size        # projection weight tile(s)
            + n_b_buf * 8 * tn * 4              # bias row (sublane-padded, f32)
            + 2 * tm * tn * out_size            # output tiles (double-buffered)
            + tm * tn * 4)                      # f32 matmul result before cast


def _choose_tiles(M, K, Ep, c_size, out_size, budget, pm_ok):
    """Returns (tm, tn, patches_bufs, weight_bufs, vmem_need)."""
    kp = _round_up(K, 128)                      # physical lane padding in VMEM
    small_e = Ep <= 256
    if M < 128:
        tms = [_round_up(max(M, 1), 16)]
    else:
        # Keep >= ~4 row tiles so both v7x TensorCores get work and the pipeline
        # has steps to overlap; allow up to 1024 rows when VMEM fits.
        cap = max(128, min(1024, _round_up(pl.cdiv(M, 4), 128)))
        tms = [t for t in (1024, 512, 256, 128) if t <= cap]
    # E-tiling only for very large embed dims (keeps the weight + f32 acc
    # bounded on v7x's 64 MiB while preserving large row tiles).
    tns = [Ep] if Ep < 2048 else [1024, 512]

    def bufs(tm, tn):
        n_w = 1 if (pm_ok and tn == Ep) else 2          # grid-constant weight
        n_p = 3 if (pm_ok and small_e and pl.cdiv(M, tm) >= 3) else 2
        return n_p, n_w

    for tm in tms:
        for tn in tns:
            n_p, n_w = bufs(tm, tn)
            need = _vmem_bytes(tm, kp, tn, c_size, out_size, n_p, n_w, n_w)
            if need <= budget:
                return tm, tn, n_p, n_w, need
    tm, tn = tms[-1], tns[-1]
    n_w = 1 if (pm_ok and tn == Ep) else 2
    need = _vmem_bytes(tm, kp, tn, c_size, out_size, 2, n_w, n_w)
    return tm, tn, 2, n_w, need


# -----------------------------------------------------------------------------
# Patchify glue (single fused XLA transpose pass; the cast fuses into it).
# -----------------------------------------------------------------------------
def _patchify(x, patch_size):
    """(B, C, *spatial) -> (B * num_patches, C * P**nd) patch-row matrix.

    K is ordered (c, p0, p1[, p2]) to match the PyTorch Conv{2,3}d weight layout
    (E, C, P, P[, P]).  No padding pass is emitted any more.
    """
    B, C = x.shape[:2]
    spatial = x.shape[2:]
    nd = len(spatial)
    P = patch_size
    assert all(s % P == 0 for s in spatial), (spatial, P)
    n = tuple(s // P for s in spatial)
    num_patches = math.prod(n)
    x = x.reshape((B, C) + tuple(v for ni in n for v in (ni, P)))
    perm = ((0,) + tuple(2 + 2 * i for i in range(nd))
            + (1,) + tuple(3 + 2 * i for i in range(nd)))
    x = x.transpose(perm)                       # (B, n0[, n1, n2], C, P, P[, P])
    K = C * P ** nd
    return x.reshape(B * num_patches, K), num_patches, K


# -----------------------------------------------------------------------------
# Public forward.
# -----------------------------------------------------------------------------
@functools.partial(jax.jit, static_argnames=("patch_size", "compute_dtype"))
def patch_embedding_fwd(x, weight, bias, *, patch_size, compute_dtype=jnp.bfloat16):
    """Pallas forward of PatchEmbedding: proj(x).flatten(2).transpose(1, 2).

    x: (B, C, H, W) or (B, C, D, H, W); weight: (E, C, P, P[, P]); bias: (E,).
    Returns (B, num_patches, E) in x.dtype.

    NOTE: the projection runs with `compute_dtype` operands (default bfloat16)
    and f32 MXU accumulation.  Pass compute_dtype=jnp.float32 for full
    Conv2d/Conv3d f32 accuracy (at ~2x HBM traffic for the patch matrix).
    """
    out_dtype = x.dtype
    B, C = x.shape[:2]
    E = weight.shape[0]
    P = patch_size

    # --- glue: ONE fused XLA pass (cast fuses into the patchify transpose). ---
    # TODO(synk): fuse the NCHW->patch-row relayout into the kernel itself
    # (BlockSpec slab over x + in-VMEM relayout, reordering the small weight's
    # K axis rather than the big activation) to drop this last HBM round trip;
    # kept out here for Mosaic relayout-lowering robustness.
    patches, num_patches, K = _patchify(x.astype(compute_dtype), P)
    M = B * num_patches

    # Conv weight (E, C, P, P[, P]) -> (K, E); row order matches the patch rows.
    w_mat = weight.reshape(E, K).T.astype(compute_dtype)
    b_row = bias.astype(jnp.float32).reshape(1, E)

    # Lane-dense output columns: pad only the small weight/bias, never patches.
    Ep = _round_up(E, 128)
    if Ep != E:
        w_mat = jnp.pad(w_mat, ((0, 0), (0, Ep - E)))
        b_row = jnp.pad(b_row, ((0, 0), (0, Ep - E)))

    c_size = jnp.dtype(compute_dtype).itemsize
    out_size = jnp.dtype(out_dtype).itemsize
    vmem_cap = _vmem_capacity_bytes()
    pm_ok = _pipeline_mode_supported()
    tm, tn, n_p_buf, n_w_buf, vmem_need = _choose_tiles(
        M, K, Ep, c_size, out_size, int(0.70 * vmem_cap), pm_ok)
    n_m = pl.cdiv(M, tm)
    n_e = pl.cdiv(Ep, tn)
    vmem_limit = int(min(int(0.95 * vmem_cap),
                         max(32 * 1024 * 1024, vmem_need + 8 * 1024 * 1024)))

    def _spec(shape, index_map, bufs):
        if bufs != 2:
            return pl.BlockSpec(shape, index_map, pipeline_mode=pl.Buffered(bufs))
        return pl.BlockSpec(shape, index_map)

    # Grid: (E tiles, M tiles).  E outermost so the weight/bias block stays
    # resident across the inner M sweep; both axes are "parallel" (megacore).
    grid_spec = pltpu.PrefetchScalarGridSpec(
        num_scalar_prefetch=0,
        grid=(n_e, n_m),
        in_specs=[
            _spec((tm, K), lambda e, m: (m, 0), n_p_buf),
            _spec((K, tn), lambda e, m: (0, e), n_w_buf),
            _spec((1, tn), lambda e, m: (0, e), n_w_buf),
        ],
        out_specs=pl.BlockSpec((tm, tn), lambda e, m: (m, e)),
    )

    cost = pl.CostEstimate(
        flops=2 * M * K * Ep,
        transcendentals=0,
        bytes_accessed=(n_e * M * K * c_size + K * Ep * c_size + Ep * 4
                        + M * Ep * out_size),
    )

    out = pl.pallas_call(
        _proj_kernel,
        out_shape=jax.ShapeDtypeStruct((M, Ep), out_dtype),
        grid_spec=grid_spec,
        compiler_params=pltpu.CompilerParams(
            dimension_semantics=("parallel", "parallel"),
            vmem_limit_bytes=vmem_limit,
        ),
        cost_estimate=cost,
    )(patches, w_mat, b_row)

    if Ep != E:
        out = out[:, :E]
    return out.reshape(B, num_patches, E)


# -----------------------------------------------------------------------------
# Pure-JAX reference (same semantics as nn.Conv2d/Conv3d with kernel=stride=P),
# with inputs rounded to the kernel's compute dtype so numerics are comparable.
# -----------------------------------------------------------------------------
def _reference(x, weight, bias, patch_size, compute_dtype):
    nsp = x.ndim - 2
    xq = x.astype(compute_dtype).astype(jnp.float32)
    wq = weight.astype(compute_dtype).astype(jnp.float32)
    dn = ("NCHW", "OIHW", "NCHW") if nsp == 2 else ("NCDHW", "OIDHW", "NCDHW")
    y = jax.lax.conv_general_dilated(
        xq, wq,
        window_strides=(patch_size,) * nsp,
        padding="VALID",
        dimension_numbers=dn,
        precision=jax.lax.Precision.HIGHEST,
    ) + bias.reshape((1, -1) + (1,) * nsp)
    B, E = y.shape[:2]
    return y.reshape(B, E, -1).transpose(0, 2, 1)


if __name__ == "__main__":
    key = jax.random.PRNGKey(0)

    # ---- 2-D case (img_dim=2): B=2, C=4, 16x16 image, patch 4, embed 32 --------
    B, C, H, W = 2, 4, 16, 16
    P, E = 4, 32
    k1, k2, k3, key = jax.random.split(key, 4)
    x2 = jax.random.normal(k1, (B, C, H, W), dtype=jnp.float32)
    w2 = jax.random.normal(k2, (E, C, P, P), dtype=jnp.float32) * 0.05
    b2 = jax.random.normal(k3, (E,), dtype=jnp.float32) * 0.05

    out2 = jax.block_until_ready(patch_embedding_fwd(x2, w2, b2, patch_size=P))
    ref2 = _reference(x2, w2, b2, P, jnp.bfloat16)
    assert out2.shape == (B, (H // P) * (W // P), E), out2.shape
    err2 = float(jnp.max(jnp.abs(out2 - ref2)))
    assert jnp.allclose(out2, ref2, atol=1e-3, rtol=1e-3), err2

    # ---- 3-D case (img_dim=3, module default): B=2, C=1, 8^3 volume, patch 4 ---
    D3 = 8
    k4, k5, k6, key = jax.random.split(key, 4)
    x3 = jax.random.normal(k4, (2, 1, D3, D3, D3), dtype=jnp.float32)
    w3 = jax.random.normal(k5, (E, 1, P, P, P), dtype=jnp.float32) * 0.05
    b3 = jax.random.normal(k6, (E,), dtype=jnp.float32) * 0.05

    out3 = jax.block_until_ready(patch_embedding_fwd(x3, w3, b3, patch_size=P))
    ref3 = _reference(x3, w3, b3, P, jnp.bfloat16)
    assert out3.shape == (2, (D3 // P) ** 3, E), out3.shape
    err3 = float(jnp.max(jnp.abs(out3 - ref3)))
    assert jnp.allclose(out3, ref3, atol=1e-3, rtol=1e-3), err3

    print("KERNEL_OK")
</pallas_src>

<mosaic_0001>
module attributes {stable_mosaic.version = 11 : i64} {
  func.func @_proj_kernel(%arg0: i32, %arg1: i32, %arg2: memref<32x64xbf16, #tpu.memory_space<vmem>>, %arg3: memref<64x128xbf16, #tpu.memory_space<vmem>>, %arg4: memref<1x128xf32, #tpu.memory_space<vmem>>, %arg5: memref<32x128xf32, #tpu.memory_space<vmem>>) attributes {dimension_semantics = [#tpu.dimension_semantics<parallel>, #tpu.dimension_semantics<parallel>], iteration_bounds = array<i64: 1, 1>, scalar_prefetch = 0 : i64, scratch_operands = 0 : i64, tpu.core_type = #tpu.core_type<tc>, window_params = [{transform_indices = @transform_0, window_bounds = array<i64: 32, 64>}, {pipeline_mode = #tpu.pipeline_mode<synchronous>, transform_indices = @transform_1, window_bounds = array<i64: 64, 128>}, {pipeline_mode = #tpu.pipeline_mode<synchronous>, transform_indices = @transform_2, window_bounds = array<i64: 1, 128>}, {transform_indices = @transform_3, window_bounds = array<i64: 32, 128>}]} {
    %c0 = arith.constant 0 : index
    %c0_0 = arith.constant 0 : index
    %0 = vector.load %arg2[%c0, %c0_0] : memref<32x64xbf16, #tpu.memory_space<vmem>>, vector<32x64xbf16>
    %c0_1 = arith.constant 0 : index
    %c0_2 = arith.constant 0 : index
    %1 = vector.load %arg3[%c0_1, %c0_2] : memref<64x128xbf16, #tpu.memory_space<vmem>>, vector<64x128xbf16>
    %cst = arith.constant dense<0.000000e+00> : vector<32x128xf32>
    %2 = tpu.matmul %0, %1, %cst {dimension_numbers = #tpu.dot_dimension_numbers<[1], [0], [0], [1], [0, 0, 1, 1], [], []>} : vector<32x64xbf16>, vector<64x128xbf16>, vector<32x128xf32> -> vector<32x128xf32>
    %c0_3 = arith.constant 0 : index
    %c0_4 = arith.constant 0 : index
    %3 = vector.load %arg4[%c0_3, %c0_4] : memref<1x128xf32, #tpu.memory_space<vmem>>, vector<1x128xf32>
    %4 = vector.broadcast %3 : vector<1x128xf32> to vector<32x128xf32>
    %5 = arith.addf %2, %4 : vector<32x128xf32>
    %c0_5 = arith.constant 0 : index
    %c0_6 = arith.constant 0 : index
    %6 = vector.load %arg5[%c0_5, %c0_6] : memref<32x128xf32, #tpu.memory_space<vmem>>, vector<32x128xf32>
    tpu.vector_store %arg5[%c0_5, %c0_6], %5 {strides = array<i32>} : memref<32x128xf32, #tpu.memory_space<vmem>>, vector<32x128xf32>,
    return
  }
  func.func @transform_0(%arg0: i32, %arg1: i32) -> (i32, i32) {
    %c0_i32 = arith.constant 0 : i32
    %c0_i32_0 = arith.constant 0 : i32
    return %arg1, %c0_i32 : i32, i32
  }
  func.func @transform_1(%arg0: i32, %arg1: i32) -> (i32, i32) {
    %c0_i32 = arith.constant 0 : i32
    %c0_i32_0 = arith.constant 0 : i32
    return %c0_i32, %arg0 : i32, i32
  }
  func.func @transform_2(%arg0: i32, %arg1: i32) -> (i32, i32) {
    %c0_i32 = arith.constant 0 : i32
    %c0_i32_0 = arith.constant 0 : i32
    return %c0_i32, %arg0 : i32, i32
  }
  func.func @transform_3(%arg0: i32, %arg1: i32) -> (i32, i32) {
    %c0_i32 = arith.constant 0 : i32
    return %arg1, %arg0 : i32, i32
  }
}

</mosaic_0001>

<llo_original>
// kernel: patch_embedding_fwd.1
$region0: #{patch_embedding_fwd.1}
  #allocation0 [shape = 'u32[]', space=smem, size = 0x4, offset = 0x4, fixed_abs, tag = 'smem constant byte address 0x4 - core index']
  #allocation1 [shape = 'u32[144,128]{1,0:T(1,128)}', space=vmem, size = 0x12000, scoped, tag = 'internal scratch']
  %s0 = inlined_call_operand.vmem [shape: bf16[32,64], index: 0, kind: input, shape index: {}]
  %s1 = inlined_call_operand.vmem [shape: bf16[64,128], index: 1, kind: input, shape index: {}]
  %s2 = inlined_call_operand.vmem [shape: f32[1,128], index: 2, kind: input, shape index: {}]
  %s3 = inlined_call_operand.hbm [shape: f32[32,128], index: 3, kind: output, shape index: {}]
  %s4 = sld [smem:[#allocation0]]
  $region22: #{patch_embedding_fwd.1} parent=0
    _
  %s6 = ssub.s32 1, %s4
  %s7 = scalar_select 0, %s6, %s4
  $region1: #{patch_embedding_fwd.1} parent=0
    #allocation2 [shape = 'u8[16384]{0}', space=vmem, size = 0x4000, scoped, tag = 'output window, operand 0, single buffered']
    #allocation3 [shape = 's32[1]{0}', space=sflag, size = 0x4, scoped, tag = 'scoped memory for patch_embedding_fwd.1']
    %8 = vsyncpa [#allocation3], 0
    // Predicated region
    $region2: #{patch_embedding_fwd.1} parent=1 // pred_check
      _
    $region3: #{patch_embedding_fwd.1} parent=1 // pred_check_branch
      %10 = sbr.rel (0) target = $region5
    $region4: #{patch_embedding_fwd.1} parent=1 // pred_region
      _
    $region5: #{patch_embedding_fwd.1} parent=1 // pred_fallthru
      _
    // Predicated region
    $region6: #{patch_embedding_fwd.1} parent=1 // pred_check
      _
    $region7: #{patch_embedding_fwd.1} parent=1 // pred_check_branch
      %12 = sbr.rel (0) target = $region9
    $region8: #{patch_embedding_fwd.1} parent=1 // pred_region
      _
    $region9: #{patch_embedding_fwd.1} parent=1 // pred_fallthru
      _
    // Predicated region
    $region10: #{patch_embedding_fwd.1} parent=1 // pred_check
      _
    $region11: #{patch_embedding_fwd.1} parent=1 // pred_check_branch
      %14 = sbr.rel (0) target = $region13
    $region12: #{patch_embedding_fwd.1} parent=1 // pred_region
      _
    $region13: #{patch_embedding_fwd.1} parent=1 // pred_fallthru
      _
    %v16 = vld [vmem:[%s0] sm:$0xf]
    %v17 = vld [vmem:[%s0 + $0x4] sm:$0xf]
    %v18 = vld [vmem:[%s0 + $0x8] sm:$0xf]
    %v19 = vld [vmem:[%s0 + $0xc] sm:$0xf]
    %v20 = vld [vmem:[%s1] sm:$0xf]
    %v21 = vld [vmem:[%s1 + $0x4] sm:$0xf]
    %v22 = vld [vmem:[%s1 + $0x8] sm:$0xf]
    %v23 = vld [vmem:[%s1 + $0xc] sm:$0xf]
    %v24 = vld [vmem:[%s1 + $0x10] sm:$0xf]
    %v25 = vld [vmem:[%s1 + $0x14] sm:$0xf]
    %v26 = vld [vmem:[%s1 + $0x18] sm:$0xf]
    %v27 = vld [vmem:[%s1 + $0x1c] sm:$0xf]
    %v28 = vld [vmem:[%s2] sm:$0x1]
    %v30 = vlaneseq
    %v31 = vshrl.u32 %v30, 7
    %v32 = vsub.s32 0, %v31
    %v33 = vrot.slane %v28, %v32
    %v39 = vunpack.c.l.b16 %v16
    %v40 = vunpack.c.l.b16 %v17
    %v41 = vunpack.c.l.b16 %v18
    %v42 = vunpack.c.l.b16 %v19
    %v43 = vpack.c.b16 %v40, %v39
    %v44 = vpack.c.b16 %v42, %v41
    %v53 = vunpack.c.l.b16 %v20
    %v54 = vunpack.c.l.b16 %v21
    %v55 = vunpack.c.l.b16 %v22
    %v56 = vunpack.c.l.b16 %v23
    %v57 = vunpack.c.l.b16 %v24
    %v58 = vunpack.c.l.b16 %v25
    %v59 = vunpack.c.l.b16 %v26
    %v60 = vunpack.c.l.b16 %v27
    %v61 = vpack.c.b16 %v54, %v53
    %v62 = vpack.c.b16 %v56, %v55
    %v63 = vpack.c.b16 %v58, %v57
    %v64 = vpack.c.b16 %v60, %v59
    %vm69 = vcmask 523264
    %v71 = vsel %vm69, %v43, 0
    %v74 = vsel %vm69, %v44, 0
    %76 = vmatprep.subr.bf16.mxu0 0
    %77 = vmatpush1.bf16.msra.mxu0 %v61
    %78 = vmatprep.subr.bf16.mxu0 0
    %79 = vmatpush1.bf16.msra.mxu0 %v62
    %80 = vmatprep.subr.bf16.mxu0 0
    %81 = vmatpush1.bf16.msra.mxu0 %v63
    %82 = vmatprep.subr.bf16.mxu0 0
    %83 = vmatpush1.bf16.msra.mxu0 %v64
    %84 = vmatprep.subr.bf16.mxu0 0
    %85 = vmatpush1.bf16.msra.mxu0 0
    %86 = vmatprep.subr.bf16.mxu0 0
    %87 = vmatpush1.bf16.msra.mxu0 0
    %88 = vmatprep.subr.bf16.mxu0 0
    %89 = vmatpush1.bf16.msra.mxu0 0
    %90 = vmatprep.subr.bf16.mxu0 0
    %91 = vmatpush1.bf16.msra.mxu0 0
    %92 = vmatprep.subr.bf16.mxu0 0
    %93 = vmatpush1.bf16.msra.mxu0 0
    %94 = vmatprep.subr.bf16.mxu0 0
    %95 = vmatpush1.bf16.msra.mxu0 0
    %96 = vmatprep.subr.bf16.mxu0 0
    %97 = vmatpush1.bf16.msra.mxu0 0
    %98 = vmatprep.subr.bf16.mxu0 0
    %99 = vmatpush1.bf16.msra.mxu0 0
    %100 = vmatprep.subr.bf16.mxu0 0
    %101 = vmatpush1.bf16.msra.mxu0 0
    %102 = vmatprep.subr.bf16.mxu0 0
    %103 = vmatpush1.bf16.msra.mxu0 0
    %104 = vmatprep.subr.bf16.mxu0 0
    %105 = vmatpush1.bf16.msra.mxu0 0
    %106 = vmatprep.subr.bf16.mxu0 0
    %107 = vmatpush1.bf16.msra.mxu0 0
    %108 = vmatprep.mubr.bf16.mxu0 0
    %109 = vmatmul.mubr.bf16.gmra.mrb[0].mxu0 %v71
    %v110 = vpop.f32.mrb[0].mxu0
    %v111 = vadd.f32 %v33, %v110
    %v112 = vpop.f32.mrb[0].mxu0
    %v113 = vpop.f32.mrb[0].mxu0
    %v114 = vadd.f32 %v33, %v113
    %v115 = vpop.f32.mrb[0].mxu0
    %116 = vmatprep.mubr.bf16.mxu0 0
    %117 = vmatmul.mubr.bf16.gmra.mrb[0].mxu0 %v74
    %v118 = vpop.f32.mrb[0].mxu0
    %v119 = vadd.f32 %v33, %v118
    %v120 = vpop.f32.mrb[0].mxu0
    %v121 = vpop.f32.mrb[0].mxu0
    %v122 = vadd.f32 %v33, %v121
    %v123 = vpop.f32.mrb[0].mxu0
    %124 = vdwg.mxu0
    %125 = vst [vmem:[#allocation2] sm:$0xff] %v111
    %126 = vst [vmem:[#allocation2 + $0x8] sm:$0xff] %v114
    %127 = vst [vmem:[#allocation2 + $0x10] sm:$0xff] %v119
    %128 = vst [vmem:[#allocation2 + $0x18] sm:$0xff] %v122
    // Predicated region
    $region14: #{patch_embedding_fwd.1} parent=1 // pred_check
      _
    $region15: #{patch_embedding_fwd.1} parent=1 // pred_check_branch
      %130 = sbr.rel (0) target = $region17
    $region16: #{patch_embedding_fwd.1} parent=1 // pred_region
      %s132 = ssub.s32 512, 512
      %133 = vsyncadd [#allocation3], %s132
      %s134 = sshll.u32 [#allocation2], 4
      %s135 = int_to_ptr.vmem [resolvable:$true] %s134
      %140 = dma.vmem_to_hbm [thread:$0]  %s135, 512, %s3, [#allocation3], 128, 128, 8
    $region17: #{patch_embedding_fwd.1} parent=1 // pred_fallthru
      _
    // Predicated region
    $region18: #{patch_embedding_fwd.1} parent=1 // pred_check
      _
    $region19: #{patch_embedding_fwd.1} parent=1 // pred_check_branch
      %142 = sbr.rel (0) target = $region21
    $region20: #{patch_embedding_fwd.1} parent=1 // pred_region
      %143 = dma.done [#allocation3], 512
    $region21: #{patch_embedding_fwd.1} parent=1 // pred_fallthru
      _
    %144 = vsyncpa [#allocation3], 1

</llo_original>
